<compile_context>
chip_gen: v7x
topology: tpu7x:2x2x1
jax: 0.10.0
libtpu: 0.0.40
codegen_flags: <defaults>
</compile_context>

<pallas_src>
import jax
import jax.numpy as jnp
from jax.experimental import pallas as pl
from jax.experimental.pallas import tpu as pltpu


def _round_up(x, m):
    return (x + m - 1) // m * m


def _tversky_kernel(p_ref, t_ref, o_ref, tp_ref, den_ref):
    """One (TM, HW_TILE) tile of the flattened (N*C, H*W) arrays.

    Accumulates per-row TP and (TP + 0.3*FP + 0.7*FN) over the spatial grid
    axis; writes the per-row Tversky index at the last spatial step.
    """
    k = pl.program_id(1)

    @pl.when(k == 0)
    def _():
        tp_ref[...] = jnp.zeros_like(tp_ref)
        den_ref[...] = jnp.zeros_like(den_ref)

    p = p_ref[...].astype(jnp.float32)
    t = t_ref[...].astype(jnp.float32)

    # TP                  = sum(p * t)
    # TP + .3*FP + .7*FN  = TP + .3*(sum_p - TP) + .7*(sum_t - TP)
    #                     = .3*sum_p + .7*sum_t = sum(0.3*p + 0.7*t)
    tp_ref[...] += jnp.sum(p * t, axis=-1, keepdims=True)            # (TM, 1)
    den_ref[...] += jnp.sum(0.3 * p + 0.7 * t, axis=-1, keepdims=True)

    @pl.when(k == pl.num_programs(1) - 1)
    def _():
        # One divide per row block (outside the hot accumulation loop);
        # smooth = 1.0 as in the PyTorch module.
        o_ref[...] = tp_ref[...] / (den_ref[...] + 1.0)


@jax.jit
def tversky_loss(pred, target):
    """Pallas implementation of TverskyLoss.forward (NCHW inputs)."""
    N, C, H, W = pred.shape
    assert target.shape == pred.shape

    M = N * C
    HW = H * W

    # Flatten to a lane-dense 2D layout (free reshape for contiguous NCHW).
    p2 = pred.reshape(M, HW)
    t2 = target.reshape(M, HW)

    # Row-block size: multiple of 8 (sublane), capped at 256 rows per step.
    TM = min(256, _round_up(M, 8))
    M_pad = _round_up(M, TM)

    # Lane-tile size: cap each f32 input block at ~4 MiB so
    # 2 inputs x 2 pipeline buffers x 4 MiB = 16 MiB fits comfortably inside
    # the default scoped VMEM limit on all of v5e / v6e / v7x.
    max_lane = max(128, ((4 * 1024 * 1024 // 4) // TM) // 128 * 128)
    if HW <= max_lane:
        HW_TILE = HW           # full last dim -> no 128-multiple requirement
        HW_pad = HW
    else:
        HW_TILE = max_lane     # multiple of 128
        HW_pad = _round_up(HW, HW_TILE)

    if M_pad != M or HW_pad != HW:
        # Zero padding is neutral for TP and the denominator sums.
        p2 = jnp.pad(p2, ((0, M_pad - M), (0, HW_pad - HW)))
        t2 = jnp.pad(t2, ((0, M_pad - M), (0, HW_pad - HW)))

    grid = (M_pad // TM, HW_pad // HW_TILE)

    # TODO(synk): for genuinely tiny inputs (N*C*H*W ~ a few KB) a pure-JAX
    # path beats kernel-launch + grid overhead; kept on the Pallas path here to
    # exercise the kernel.
    terms = pl.pallas_call(
        _tversky_kernel,
        out_shape=jax.ShapeDtypeStruct((M_pad, 1), jnp.float32),
        grid_spec=pltpu.PrefetchScalarGridSpec(
            num_scalar_prefetch=0,
            grid=grid,
            in_specs=[
                pl.BlockSpec((TM, HW_TILE), lambda i, k: (i, k)),
                pl.BlockSpec((TM, HW_TILE), lambda i, k: (i, k)),
            ],
            # Per-row-block output column; constant across the reduction axis k
            # (accumulator pattern), varies with the parallel row axis i.
            out_specs=pl.BlockSpec((TM, 1), lambda i, k: (i, 0)),
            scratch_shapes=[
                pltpu.VMEM((TM, 1), jnp.float32),   # TP accumulator
                pltpu.VMEM((TM, 1), jnp.float32),   # TP + .3FP + .7FN accumulator
            ],
        ),
        compiler_params=pltpu.CompilerParams(
            dimension_semantics=("parallel", "arbitrary"),
        ),
    )(p2, t2)

    # Epilogue: matches the PyTorch module.
    #   dice_n = (1/C) * sum_c term_{n,c} ;  loss = clamp(mean_n(1 - dice_n), 0, 2)
    per_nc = terms[:M, 0].reshape(N, C)
    dice = jnp.sum(per_nc, axis=1) / jnp.float32(C)
    return jnp.clip(jnp.mean(1.0 - dice), 0.0, 2.0)


def tversky_loss_ref(pred, target):
    """Pure-JAX reference mirroring the PyTorch forward exactly."""
    smooth = 1.0
    N, C, H, W = pred.shape
    dice = jnp.zeros((N,), jnp.float32)
    for i in range(C):
        p = pred[:, i]
        t = target[:, i]
        tp = (p * t).sum(axis=1).sum(axis=1)
        fp = (p * (1.0 - t)).sum(axis=1).sum(axis=1)
        fn = ((1.0 - p) * t).sum(axis=1).sum(axis=1)
        dice = dice + tp / (tp + 0.3 * fp + 0.7 * fn + smooth)
    dice = dice / C
    return jnp.clip(jnp.mean(1.0 - dice), 0.0, 2.0)


if __name__ == "__main__":
    key = jax.random.PRNGKey(0)
    k1, k2 = jax.random.split(key)

    N, C, H, W = 2, 4, 16, 16
    # pred ~ sigmoid-ish probabilities, target ~ binary masks
    pred = jax.nn.sigmoid(jax.random.normal(k1, (N, C, H, W), jnp.float32))
    target = (jax.random.uniform(k2, (N, C, H, W), jnp.float32) > 0.5).astype(
        jnp.float32
    )

    loss = tversky_loss(pred, target)
    loss = jax.block_until_ready(loss)

    ref = tversky_loss_ref(pred, target)
    assert jnp.allclose(loss, ref, rtol=1e-5, atol=1e-5), (loss, ref)

    print("KERNEL_OK")
</pallas_src>

<mosaic_0001>
module attributes {stable_mosaic.version = 11 : i64} {
  func.func @_tversky_kernel(%arg0: i32, %arg1: i32, %arg2: memref<8x256xf32, #tpu.memory_space<vmem>>, %arg3: memref<8x256xf32, #tpu.memory_space<vmem>>, %arg4: memref<8x1xf32, #tpu.memory_space<vmem>>, %arg5: memref<8x1xf32, #tpu.memory_space<vmem>>, %arg6: memref<8x1xf32, #tpu.memory_space<vmem>>) attributes {dimension_semantics = [#tpu.dimension_semantics<parallel>, #tpu.dimension_semantics<arbitrary>], iteration_bounds = array<i64: 1, 1>, scalar_prefetch = 0 : i64, scratch_operands = 2 : i64, tpu.core_type = #tpu.core_type<tc>, window_params = [{transform_indices = @transform_0, window_bounds = array<i64: 8, 256>}, {transform_indices = @transform_1, window_bounds = array<i64: 8, 256>}, {transform_indices = @transform_2, window_bounds = array<i64: 8, 1>}]} {
    %c0_i32 = arith.constant 0 : i32
    %0 = arith.cmpi eq, %arg1, %c0_i32 : i32
    %1 = arith.extui %0 : i1 to i32
    %c0_i32_0 = arith.constant 0 : i32
    %2 = arith.cmpi ne, %1, %c0_i32_0 : i32
    scf.if %2 {
      %cst_17 = arith.constant 0.000000e+00 : f32
      %24 = vector.broadcast %cst_17 : f32 to vector<8x1xf32>
      %c0_18 = arith.constant 0 : index
      %c0_19 = arith.constant 0 : index
      %25 = vector.load %arg5[%c0_18, %c0_19] : memref<8x1xf32, #tpu.memory_space<vmem>>, vector<8x1xf32>
      tpu.vector_store %arg5[%c0_18, %c0_19], %24 {strides = array<i32>} : memref<8x1xf32, #tpu.memory_space<vmem>>, vector<8x1xf32>,
      %cst_20 = arith.constant 0.000000e+00 : f32
      %26 = vector.broadcast %cst_20 : f32 to vector<8x1xf32>
      %c0_21 = arith.constant 0 : index
      %c0_22 = arith.constant 0 : index
      %27 = vector.load %arg6[%c0_21, %c0_22] : memref<8x1xf32, #tpu.memory_space<vmem>>, vector<8x1xf32>
      tpu.vector_store %arg6[%c0_21, %c0_22], %26 {strides = array<i32>} : memref<8x1xf32, #tpu.memory_space<vmem>>, vector<8x1xf32>,
    } else {
    }
    %c0 = arith.constant 0 : index
    %c0_1 = arith.constant 0 : index
    %3 = vector.load %arg2[%c0, %c0_1] : memref<8x256xf32, #tpu.memory_space<vmem>>, vector<8x256xf32>
    %c0_2 = arith.constant 0 : index
    %c0_3 = arith.constant 0 : index
    %4 = vector.load %arg3[%c0_2, %c0_3] : memref<8x256xf32, #tpu.memory_space<vmem>>, vector<8x256xf32>
    %c0_4 = arith.constant 0 : index
    %c0_5 = arith.constant 0 : index
    %5 = vector.load %arg5[%c0_4, %c0_5] : memref<8x1xf32, #tpu.memory_space<vmem>>, vector<8x1xf32>
    %6 = arith.mulf %3, %4 : vector<8x256xf32>
    %cst = arith.constant dense<0.000000e+00> : vector<8xf32>
    %7 = vector.multi_reduction <add>, %6, %cst [1] : vector<8x256xf32> to vector<8xf32>
    %8 = vector.shape_cast %7 : vector<8xf32> to vector<8x1xf32>
    %9 = arith.addf %5, %8 : vector<8x1xf32>
    %c0_6 = arith.constant 0 : index
    %c0_7 = arith.constant 0 : index
    %10 = vector.load %arg5[%c0_6, %c0_7] : memref<8x1xf32, #tpu.memory_space<vmem>>, vector<8x1xf32>
    tpu.vector_store %arg5[%c0_6, %c0_7], %9 {strides = array<i32>} : memref<8x1xf32, #tpu.memory_space<vmem>>, vector<8x1xf32>,
    %c0_8 = arith.constant 0 : index
    %c0_9 = arith.constant 0 : index
    %11 = vector.load %arg6[%c0_8, %c0_9] : memref<8x1xf32, #tpu.memory_space<vmem>>, vector<8x1xf32>
    %cst_10 = arith.constant 3.000000e-01 : f32
    %12 = vector.broadcast %cst_10 : f32 to vector<8x256xf32>
    %13 = arith.mulf %12, %3 : vector<8x256xf32>
    %cst_11 = arith.constant 0.699999988 : f32
    %14 = vector.broadcast %cst_11 : f32 to vector<8x256xf32>
    %15 = arith.mulf %14, %4 : vector<8x256xf32>
    %16 = arith.addf %13, %15 : vector<8x256xf32>
    %cst_12 = arith.constant dense<0.000000e+00> : vector<8xf32>
    %17 = vector.multi_reduction <add>, %16, %cst_12 [1] : vector<8x256xf32> to vector<8xf32>
    %18 = vector.shape_cast %17 : vector<8xf32> to vector<8x1xf32>
    %19 = arith.addf %11, %18 : vector<8x1xf32>
    %c0_13 = arith.constant 0 : index
    %c0_14 = arith.constant 0 : index
    %20 = vector.load %arg6[%c0_13, %c0_14] : memref<8x1xf32, #tpu.memory_space<vmem>>, vector<8x1xf32>
    tpu.vector_store %arg6[%c0_13, %c0_14], %19 {strides = array<i32>} : memref<8x1xf32, #tpu.memory_space<vmem>>, vector<8x1xf32>,
    %c0_i32_15 = arith.constant 0 : i32
    %21 = arith.cmpi eq, %arg1, %c0_i32_15 : i32
    %22 = arith.extui %21 : i1 to i32
    %c0_i32_16 = arith.constant 0 : i32
    %23 = arith.cmpi ne, %22, %c0_i32_16 : i32
    scf.if %23 {
      %c0_17 = arith.constant 0 : index
      %c0_18 = arith.constant 0 : index
      %24 = vector.load %arg5[%c0_17, %c0_18] : memref<8x1xf32, #tpu.memory_space<vmem>>, vector<8x1xf32>
      %c0_19 = arith.constant 0 : index
      %c0_20 = arith.constant 0 : index
      %25 = vector.load %arg6[%c0_19, %c0_20] : memref<8x1xf32, #tpu.memory_space<vmem>>, vector<8x1xf32>
      %cst_21 = arith.constant 1.000000e+00 : f32
      %26 = vector.broadcast %cst_21 : f32 to vector<8x1xf32>
      %27 = arith.addf %25, %26 : vector<8x1xf32>
      %28 = arith.divf %24, %27 : vector<8x1xf32>
      %c0_22 = arith.constant 0 : index
      %c0_23 = arith.constant 0 : index
      %29 = vector.load %arg4[%c0_22, %c0_23] : memref<8x1xf32, #tpu.memory_space<vmem>>, vector<8x1xf32>
      tpu.vector_store %arg4[%c0_22, %c0_23], %28 {strides = array<i32>} : memref<8x1xf32, #tpu.memory_space<vmem>>, vector<8x1xf32>,
    } else {
    }
    return
  }
  func.func @transform_0(%arg0: i32, %arg1: i32) -> (i32, i32) {
    %c0_i32 = arith.constant 0 : i32
    return %arg0, %arg1 : i32, i32
  }
  func.func @transform_1(%arg0: i32, %arg1: i32) -> (i32, i32) {
    %c0_i32 = arith.constant 0 : i32
    return %arg0, %arg1 : i32, i32
  }
  func.func @transform_2(%arg0: i32, %arg1: i32) -> (i32, i32) {
    %c0_i32 = arith.constant 0 : i32
    %c0_i32_0 = arith.constant 0 : i32
    return %arg0, %c0_i32 : i32, i32
  }
}

</mosaic_0001>

<llo_original>
// kernel: squeeze.1
$region0: #{squeeze.1}
  %s0 = inlined_call_operand.vmem [shape: f32[8], index: 0, kind: input, shape index: {}]
  %s1 = inlined_call_operand.vmem [shape: f32[2,4], index: 1, kind: output, shape index: {}]
  $region1: #{squeeze.1} parent=0
    #allocation0 [shape = 'u8[4096]{0}', space=vmem, size = 0x1000, scoped, tag = 'scoped mem for output reshape']
    #allocation1 [shape = 'u8[4096]{0}', space=vmem, size = 0x1000, scoped, tag = 'scoped mem for input reshape']
    %s3 = sshllo.u32 0, 1
    %v4 = vld [vmem:[%s0] sm:%s3]
    %5 = vst [vmem:[#allocation1] sm:%s3] %v4
    %v6 = vld [vmem:[#allocation1] sm:$0x1]
    %vm7 = vcmask 31744
    %8 = vst.msk [vmem:[#allocation0] sm:$0x1] %vm7, %v6
    %v9 = vld [vmem:[#allocation1] sm:$0x1]
    %10 = vrot.lane.b32.xlu0 %v9, 124
    %v11 = vpop.permute.xlu0 %10
    %vm12 = vcmask 31744
    %s13 = scalar_lea.vmem [#allocation0], 1
    %14 = vst.msk [vmem:[%s13] sm:$0x1] %vm12, %v11
    %s16 = sshllo.u32 0, 2
    %v18 = vld [vmem:[#allocation0] sm:%s16]
    %s19 = sshllo.u32 0, 2
    %20 = vst [vmem:[%s1] sm:%s19] %v18

// kernel: tversky_loss.1
$region0: #{tversky_loss.1}
  #allocation0 [shape = 'u32[]', space=smem, size = 0x4, offset = 0x4, fixed_abs, tag = 'smem constant byte address 0x4 - core index']
  #allocation1 [shape = 'u32[144,128]{1,0:T(1,128)}', space=vmem, size = 0x12000, scoped, tag = 'internal scratch']
  #allocation2 [shape = 'f32[8,1]{1,0:T(8,128)}', space=vmem, size = 0x1000, scoped, tag = 'scratch operand']
  #allocation3 [shape = 'f32[8,1]{1,0:T(8,128)}', space=vmem, size = 0x1000, scoped, tag = 'scratch operand']
  %s0 = inlined_call_operand.vmem [shape: f32[8,256], index: 0, kind: input, shape index: {}]
  %s1 = inlined_call_operand.vmem [shape: f32[8,256], index: 1, kind: input, shape index: {}]
  %s2 = inlined_call_operand.vmem [shape: f32[8,1], index: 2, kind: output, shape index: {}]
  %s3 = sld [smem:[#allocation0]]
  $region26: #{tversky_loss.1} parent=0
    _
  %s5 = ssub.s32 1, %s3
  %s6 = scalar_select 0, %s5, %s3
  // Predicated region
  $region2: #{tversky_loss.1} parent=0 // pred_check
    _
  $region3: #{tversky_loss.1} parent=0 // pred_check_branch
    %8 = sbr.rel (0) target = $region5
  $region4: #{tversky_loss.1} parent=0 // pred_region
    _
  $region5: #{tversky_loss.1} parent=0 // pred_fallthru
    _
  // Predicated region
  $region6: #{tversky_loss.1} parent=0 // pred_check
    _
  $region7: #{tversky_loss.1} parent=0 // pred_check_branch
    %10 = sbr.rel (0) target = $region9
  $region8: #{tversky_loss.1} parent=0 // pred_region
    _
  $region9: #{tversky_loss.1} parent=0 // pred_fallthru
    _
  %p11 = scmp.eq.s32.totalorder 0, 0
  // Predicated region
  $region10: #{tversky_loss.1} parent=0 // pred_check
    %p12 = pneg %p11
  $region11: #{tversky_loss.1} parent=0 // pred_check_branch
    %14 = sbr.rel (%p12) target = $region13
  $region12: #{tversky_loss.1} parent=0 // pred_region
    %vm15 = vcmask 7168
    %16 = vst.msk [vmem:[#allocation2] sm:$0xff] %vm15, 0.0
    %17 = vst.msk [vmem:[#allocation3] sm:$0xff] %vm15, 0.0
  $region13: #{tversky_loss.1} parent=0 // pred_fallthru
    _
  %v18 = vld [vmem:[%s0] sm:$0xff]
  %v19 = vld [vmem:[%s0 + $0x8] sm:$0xff]
  %v20 = vld [vmem:[%s1] sm:$0xff]
  %v21 = vld [vmem:[%s1 + $0x8] sm:$0xff]
  %v22 = vld [vmem:[#allocation2] sm:$0xff]
  %v23 = vmul.f32 %v18, %v20
  %v24 = vmul.f32 %v19, %v21
  %v25 = vadd.f32 %v23, %v24
  %26 = vadd.xlane.f32.xlu0 %v25
  %v27 = vpop.xlane.xlu0 %26
  %v28 = vadd.f32 %v22, %v27
  %vm29 = vcmask 7168
  %30 = vst.msk [vmem:[#allocation2] sm:$0xff] %vm29, %v28
  %v31 = vld [vmem:[#allocation3] sm:$0xff]
  %v32 = vmul.f32 %v18, 0.3
  %v33 = vmul.f32 %v19, 0.3
  %v34 = vmul.f32 %v20, 0.7
  %v35 = vmul.f32 %v21, 0.7
  %v36 = vadd.f32 %v32, %v34
  %v37 = vadd.f32 %v33, %v35
  %v38 = vadd.f32 %v36, %v37
  %39 = vadd.xlane.f32.xlu0 %v38
  %v40 = vpop.xlane.xlu0 %39
  %v41 = vadd.f32 %v31, %v40
  %42 = vst.msk [vmem:[#allocation3] sm:$0xff] %vm29, %v41
  // Predicated region
  $region14: #{tversky_loss.1} parent=0 // pred_check
    %p43 = pneg %p11
  $region15: #{tversky_loss.1} parent=0 // pred_check_branch
    %45 = sbr.rel (%p43) target = $region17
  $region16: #{tversky_loss.1} parent=0 // pred_region
    %v46 = vld [vmem:[#allocation2] sm:$0xff]
    %v47 = vld [vmem:[#allocation3] sm:$0xff]
    %v48 = vadd.f32 %v47, 1.0
    %v49 = vrcp.pop %v48
    %v50 = vmul.f32 %v46, %v49
    %51 = vst.msk [vmem:[%s2] sm:$0xff] %vm29, %v50
  $region17: #{tversky_loss.1} parent=0 // pred_fallthru
    _
  // Predicated region
  $region18: #{tversky_loss.1} parent=0 // pred_check
    _
  $region19: #{tversky_loss.1} parent=0 // pred_check_branch
    %53 = sbr.rel (0) target = $region21
  $region20: #{tversky_loss.1} parent=0 // pred_region
    _
  $region21: #{tversky_loss.1} parent=0 // pred_fallthru
    _
  // Predicated region
  $region22: #{tversky_loss.1} parent=0 // pred_check
    _
  $region23: #{tversky_loss.1} parent=0 // pred_check_branch
    %55 = sbr.rel (0) target = $region25
  $region24: #{tversky_loss.1} parent=0 // pred_region
    _
  $region25: #{tversky_loss.1} parent=0 // pred_fallthru
    _

</llo_original>
